<compile_context>
chip_gen: v5e
topology: v5e:2x2
jax: 0.10.0
libtpu: 0.0.40
codegen_flags: <defaults>
</compile_context>

<pallas_src>
import functools

import jax
import jax.numpy as jnp
from jax.experimental import pallas as pl
from jax.experimental.pallas import tpu as pltpu

LANE = 128     # TPU lane width: feature blocks are padded to this
SUBLANE = 8    # f32 sublane count: batch is padded to this


def _round_up(n, m):
    return ((n + m - 1) // m) * m


# ------------------------------ fused Pallas kernel ---------------------------
def make_fused_kernel(num_layers, m_max, h_pad):
    """Whole forward pass (start, gated hidden layers, end head) in one kernel.

    Ref order: x, w_start_packed, w_blockdiag(L), w_end, gates(L+1), biases(L+1), b_end, out
    All activations stay in VMEM/vregs as a lane-dense (Bp, M*Hp) slab.
    """

    def kernel(x_ref, ws_ref, wbd_ref, we_ref, g_ref, b_ref, be_ref, out_ref):
        # ---- start modules: one packed lane-dense matmul -> (Bp, M*Hp) slab ----
        prev = jnp.dot(x_ref[...], ws_ref[...],
                       preferred_element_type=jnp.float32) + b_ref[0]

        # ---- hidden layers: gated mix (VPU) -> block-diag matmul (MXU) -> ReLU ----
        for li in range(num_layers):
            blocks = []
            for j in range(m_max):
                t = g_ref[li, j] * prev                       # (Bp, M*Hp) whole-vreg mul
                mj = t[:, 0:h_pad]                            # 128-aligned lane blocks
                for i in range(1, m_max):
                    mj = mj + t[:, i * h_pad:(i + 1) * h_pad]
                blocks.append(mj)
            mix = jnp.concatenate(blocks, axis=1)             # (Bp, M*Hp) lane-dense
            y = jnp.dot(mix, wbd_ref[li],
                        preferred_element_type=jnp.float32) + b_ref[li + 1]
            prev = jnp.maximum(y, 0.0)

        # ---- end module (t=None -> end_modules[0]); lane-dense padded output ----
        t = g_ref[num_layers, 0] * prev
        mix = t[:, 0:h_pad]
        for i in range(1, m_max):
            mix = mix + t[:, i * h_pad:(i + 1) * h_pad]
        y = jnp.dot(mix, we_ref[...],
                    preferred_element_type=jnp.float32) + be_ref[...]
        out_ref[...] = y.astype(out_ref.dtype)

    return kernel


# ------------------------------ host-side packing ------------------------------
def pack_params(params):
    """One-time host-side weight repacking (not on the hot path).

    If M_START != M, phantom modules get zero gate rows / zero weight blocks so they
    contribute exactly zero.
    """
    w_start, b_start, w_layers, b_layers, w_end, b_end = params
    m_start, in_dim, h = w_start.shape
    num_layers = len(w_layers)
    m = w_layers[0].shape[0] if num_layers else m_start
    out_dim = w_end.shape[-1]

    m_max = max(m_start, m)
    h_pad = _round_up(h, LANE)
    in_pad = _round_up(in_dim, LANE)
    out_pad = _round_up(out_dim, LANE)
    mh = m_max * h_pad

    # start: (IN_pad, M*Hp) packed column blocks
    ws = jnp.zeros((in_pad, mh), jnp.float32)
    for mi in range(m_start):
        ws = ws.at[:in_dim, mi * h_pad:mi * h_pad + h].set(w_start[mi])

    # hidden: block-diagonal (L, M*Hp, M*Hp)
    wbd = jnp.zeros((max(num_layers, 1), mh, mh), jnp.float32)
    for li in range(num_layers):
        for mi in range(m):
            wbd = wbd.at[li,
                         mi * h_pad:mi * h_pad + h,
                         mi * h_pad:mi * h_pad + h].set(w_layers[li][mi])

    # biases: (L+1, 1, M*Hp); index 0 = start, 1..L = hidden layers
    b_all = jnp.zeros((num_layers + 1, 1, mh), jnp.float32)
    for mi in range(m_start):
        b_all = b_all.at[0, 0, mi * h_pad:mi * h_pad + h].set(b_start[mi, 0])
    for li in range(num_layers):
        for mi in range(m):
            b_all = b_all.at[li + 1, 0, mi * h_pad:mi * h_pad + h].set(b_layers[li][mi, 0])

    # end head, lane-padded
    we = jnp.zeros((h_pad, out_pad), jnp.float32).at[:h, :out_dim].set(w_end[0])
    be = jnp.zeros((1, out_pad), jnp.float32).at[:, :out_dim].set(b_end[0])

    meta = dict(num_layers=num_layers, m_max=m_max, h_pad=h_pad,
                in_pad=in_pad, out_dim=out_dim, out_pad=out_pad)
    return (ws, wbd, we, b_all, be), meta


def _expand_gate(g, b_pad, m_max, h_pad):
    """(m_out, B, m_in) gate -> (m_max, Bp, m_max*Hp) with [j,b,i*Hp+h] = g[j,b,i]."""
    m_out, b, m_in = g.shape
    g = jnp.pad(g.astype(jnp.float32),
                ((0, m_max - m_out), (0, b_pad - b), (0, m_max - m_in)))
    return jnp.repeat(g, h_pad, axis=-1)


# ------------------------------ fused forward pass ------------------------------
def gated_modular_net_forward(x, gates, packed, meta):
    """Pallas implementation of GatedModularNet.forward(x, sampled_g, t=None)."""
    g_layers, g_end = gates
    ws, wbd, we, b_all, be = packed
    num_layers = meta["num_layers"]
    m_max, h_pad = meta["m_max"], meta["h_pad"]
    in_pad, out_dim, out_pad = meta["in_pad"], meta["out_dim"], meta["out_pad"]
    mh = m_max * h_pad

    b = x.shape[0]
    b_pad = _round_up(b, SUBLANE)

    # per-forward, inside jit (cheap XLA ops feeding the kernel)
    x_p = jnp.pad(x.astype(jnp.float32), ((0, b_pad - b), (0, in_pad - x.shape[1])))
    g_all = jnp.stack([_expand_gate(g, b_pad, m_max, h_pad)
                       for g in (list(g_layers) + [g_end])])   # (L+1, M, Bp, M*Hp)

    inputs = (x_p, ws, wbd, we, g_all, b_all, be)

    flops = 2 * b_pad * (in_pad * mh + num_layers * mh * mh + h_pad * out_pad)
    bytes_accessed = 4 * (x_p.size + ws.size + wbd.size + we.size +
                          g_all.size + b_all.size + be.size + b_pad * out_pad)

    kernel = make_fused_kernel(num_layers, m_max, h_pad)
    vmem = lambda: pl.BlockSpec(memory_space=pltpu.MemorySpace.VMEM)

    out = pl.pallas_call(
        kernel,
        out_shape=jax.ShapeDtypeStruct((b_pad, out_pad), jnp.float32),
        in_specs=[vmem() for _ in range(len(inputs))],
        out_specs=vmem(),
        compiler_params=pltpu.CompilerParams(vmem_limit_bytes=32 * 1024 * 1024),
        cost_estimate=pl.CostEstimate(flops=flops, transcendentals=0,
                                      bytes_accessed=bytes_accessed),
    )(*inputs)
    return out[:b, :out_dim]


# ------------------------------ pure-JAX reference ------------------------------
def ref_forward(x, params, gates):
    w_start, b_start, w_layers, b_layers, w_end, b_end = params
    g_layers, g_end = gates
    prev = jnp.einsum("bi,mio->mbo", x, w_start) + b_start      # (M_START, B, H)
    for li in range(len(w_layers)):
        mixed = jnp.einsum("jbi,ibh->jbh", g_layers[li], prev)
        prev = jnp.maximum(
            jnp.einsum("jbh,jho->jbo", mixed, w_layers[li]) + b_layers[li], 0.0)
    mixed = jnp.einsum("jbi,ibh->jbh", g_end, prev)
    out = jnp.einsum("jbh,jho->jbo", mixed, w_end) + b_end
    return out[0]


# ------------------------------------ main --------------------------------------
if __name__ == "__main__":
    B, IN, H, OUT = 2, 16, 32, 8
    M_START, M, NUM_LAYERS = 3, 3, 2

    key = jax.random.PRNGKey(0)
    keys = jax.random.split(key, 16)

    # Deterministic synthetic parameters (weights stored (module, in, out)).
    w_start = 0.1 * jax.random.normal(keys[0], (M_START, IN, H), jnp.float32)
    b_start = 0.1 * jax.random.normal(keys[1], (M_START, 1, H), jnp.float32)
    w_layers = [0.1 * jax.random.normal(keys[2 + li], (M, H, H), jnp.float32)
                for li in range(NUM_LAYERS)]
    b_layers = [0.1 * jax.random.normal(keys[4 + li], (M, 1, H), jnp.float32)
                for li in range(NUM_LAYERS)]
    w_end = 0.1 * jax.random.normal(keys[6], (1, H, OUT), jnp.float32)
    b_end = 0.1 * jax.random.normal(keys[7], (1, 1, OUT), jnp.float32)
    params = (w_start, b_start, w_layers, b_layers, w_end, b_end)

    # sampled_g, torch convention stacked per layer as (M_out, B, M_in),
    # softmax-normalized over M_in.
    g1 = jax.nn.softmax(jax.random.normal(keys[8], (M, B, M_START)), axis=-1)
    g2 = jax.nn.softmax(jax.random.normal(keys[9], (M, B, M)), axis=-1)
    g_end = jax.nn.softmax(jax.random.normal(keys[10], (1, B, M)), axis=-1)
    gates = ((g1, g2), g_end)

    # Input
    x = jax.random.normal(keys[11], (B, IN), jnp.float32)

    # One-time host-side weight packing (lane padding, block-diag hidden weights).
    packed, meta = pack_params(params)

    # x, gates, packed weights are jit ARGUMENTS (gates change every forward);
    # only the static shape metadata is bound.
    fwd = jax.jit(functools.partial(gated_modular_net_forward, meta=meta))
    out = jax.block_until_ready(fwd(x, gates, packed))

    ref = ref_forward(x, params, gates)
    assert out.shape == (B, OUT)
    assert jnp.allclose(out, ref, rtol=2e-3, atol=2e-3), (out, ref)

    print("KERNEL_OK")
</pallas_src>

<mosaic_0001>
module attributes {stable_mosaic.version = 11 : i64} {
  func.func @kernel(%arg0: memref<8x128xf32, #tpu.memory_space<vmem>>, %arg1: memref<128x384xf32, #tpu.memory_space<vmem>>, %arg2: memref<2x384x384xf32, #tpu.memory_space<vmem>>, %arg3: memref<128x128xf32, #tpu.memory_space<vmem>>, %arg4: memref<3x3x8x384xf32, #tpu.memory_space<vmem>>, %arg5: memref<3x1x384xf32, #tpu.memory_space<vmem>>, %arg6: memref<1x128xf32, #tpu.memory_space<vmem>>, %arg7: memref<8x128xf32, #tpu.memory_space<vmem>>) attributes {dimension_semantics = [], scalar_prefetch = 0 : i64, scratch_operands = 0 : i64, tpu.core_type = #tpu.core_type<tc>} {
    %c0 = arith.constant 0 : index
    %c0_0 = arith.constant 0 : index
    %0 = vector.load %arg0[%c0, %c0_0] : memref<8x128xf32, #tpu.memory_space<vmem>>, vector<8x128xf32>
    %c0_1 = arith.constant 0 : index
    %c0_2 = arith.constant 0 : index
    %1 = vector.load %arg1[%c0_1, %c0_2] : memref<128x384xf32, #tpu.memory_space<vmem>>, vector<128x384xf32>
    %cst = arith.constant dense<0.000000e+00> : vector<8x384xf32>
    %2 = tpu.matmul %0, %1, %cst {dimension_numbers = #tpu.dot_dimension_numbers<[1], [0], [0], [1], [0, 0, 1, 1], [], []>} : vector<8x128xf32>, vector<128x384xf32>, vector<8x384xf32> -> vector<8x384xf32>
    %c0_3 = arith.constant 0 : index
    %c0_4 = arith.constant 0 : index
    %c0_5 = arith.constant 0 : index
    %3 = vector.load %arg5[%c0_3, %c0_4, %c0_5] : memref<3x1x384xf32, #tpu.memory_space<vmem>>, vector<1x1x384xf32>
    %4 = vector.shape_cast %3 : vector<1x1x384xf32> to vector<1x384xf32>
    %5 = vector.broadcast %4 : vector<1x384xf32> to vector<8x384xf32>
    %6 = arith.addf %2, %5 : vector<8x384xf32>
    %c0_6 = arith.constant 0 : index
    %c0_7 = arith.constant 0 : index
    %c0_8 = arith.constant 0 : index
    %c0_9 = arith.constant 0 : index
    %7 = vector.load %arg4[%c0_6, %c0_7, %c0_8, %c0_9] : memref<3x3x8x384xf32, #tpu.memory_space<vmem>>, vector<1x1x8x384xf32>
    %8 = vector.shape_cast %7 : vector<1x1x8x384xf32> to vector<8x384xf32>
    %9 = arith.mulf %8, %6 : vector<8x384xf32>
    %10 = vector.extract_strided_slice %9 {offsets = [0, 0], sizes = [8, 128], strides = [1, 1]} : vector<8x384xf32> to vector<8x128xf32>
    %11 = vector.extract_strided_slice %9 {offsets = [0, 128], sizes = [8, 128], strides = [1, 1]} : vector<8x384xf32> to vector<8x128xf32>
    %12 = arith.addf %10, %11 : vector<8x128xf32>
    %13 = vector.extract_strided_slice %9 {offsets = [0, 256], sizes = [8, 128], strides = [1, 1]} : vector<8x384xf32> to vector<8x128xf32>
    %14 = arith.addf %12, %13 : vector<8x128xf32>
    %c0_10 = arith.constant 0 : index
    %c1 = arith.constant 1 : index
    %c0_11 = arith.constant 0 : index
    %c0_12 = arith.constant 0 : index
    %15 = vector.load %arg4[%c0_10, %c1, %c0_11, %c0_12] : memref<3x3x8x384xf32, #tpu.memory_space<vmem>>, vector<1x1x8x384xf32>
    %16 = vector.shape_cast %15 : vector<1x1x8x384xf32> to vector<8x384xf32>
    %17 = arith.mulf %16, %6 : vector<8x384xf32>
    %18 = vector.extract_strided_slice %17 {offsets = [0, 0], sizes = [8, 128], strides = [1, 1]} : vector<8x384xf32> to vector<8x128xf32>
    %19 = vector.extract_strided_slice %17 {offsets = [0, 128], sizes = [8, 128], strides = [1, 1]} : vector<8x384xf32> to vector<8x128xf32>
    %20 = arith.addf %18, %19 : vector<8x128xf32>
    %21 = vector.extract_strided_slice %17 {offsets = [0, 256], sizes = [8, 128], strides = [1, 1]} : vector<8x384xf32> to vector<8x128xf32>
    %22 = arith.addf %20, %21 : vector<8x128xf32>
    %c0_13 = arith.constant 0 : index
    %c2 = arith.constant 2 : index
    %c0_14 = arith.constant 0 : index
    %c0_15 = arith.constant 0 : index
    %23 = vector.load %arg4[%c0_13, %c2, %c0_14, %c0_15] : memref<3x3x8x384xf32, #tpu.memory_space<vmem>>, vector<1x1x8x384xf32>
    %24 = vector.shape_cast %23 : vector<1x1x8x384xf32> to vector<8x384xf32>
    %25 = arith.mulf %24, %6 : vector<8x384xf32>
    %26 = vector.extract_strided_slice %25 {offsets = [0, 0], sizes = [8, 128], strides = [1, 1]} : vector<8x384xf32> to vector<8x128xf32>
    %27 = vector.extract_strided_slice %25 {offsets = [0, 128], sizes = [8, 128], strides = [1, 1]} : vector<8x384xf32> to vector<8x128xf32>
    %28 = arith.addf %26, %27 : vector<8x128xf32>
    %29 = vector.extract_strided_slice %25 {offsets = [0, 256], sizes = [8, 128], strides = [1, 1]} : vector<8x384xf32> to vector<8x128xf32>
    %30 = arith.addf %28, %29 : vector<8x128xf32>
    %31 = tpu.concatenate %14, %22, %30 in 1 : vector<8x128xf32>, vector<8x128xf32>, vector<8x128xf32> -> vector<8x384xf32>
    %c0_16 = arith.constant 0 : index
    %c0_17 = arith.constant 0 : index
    %c0_18 = arith.constant 0 : index
    %32 = vector.load %arg2[%c0_16, %c0_17, %c0_18] : memref<2x384x384xf32, #tpu.memory_space<vmem>>, vector<1x384x384xf32>
    %33 = vector.shape_cast %32 : vector<1x384x384xf32> to vector<384x384xf32>
    %cst_19 = arith.constant dense<0.000000e+00> : vector<8x384xf32>
    %34 = tpu.matmul %31, %33, %cst_19 {dimension_numbers = #tpu.dot_dimension_numbers<[1], [0], [0], [1], [0, 0, 1, 1], [], []>} : vector<8x384xf32>, vector<384x384xf32>, vector<8x384xf32> -> vector<8x384xf32>
    %c1_20 = arith.constant 1 : index
    %c0_21 = arith.constant 0 : index
    %c0_22 = arith.constant 0 : index
    %35 = vector.load %arg5[%c1_20, %c0_21, %c0_22] : memref<3x1x384xf32, #tpu.memory_space<vmem>>, vector<1x1x384xf32>
    %36 = vector.shape_cast %35 : vector<1x1x384xf32> to vector<1x384xf32>
    %37 = vector.broadcast %36 : vector<1x384xf32> to vector<8x384xf32>
    %38 = arith.addf %34, %37 : vector<8x384xf32>
    %cst_23 = arith.constant 0.000000e+00 : f32
    %39 = vector.broadcast %cst_23 : f32 to vector<8x384xf32>
    %40 = arith.maximumf %38, %39 : vector<8x384xf32>
    %c1_24 = arith.constant 1 : index
    %c0_25 = arith.constant 0 : index
    %c0_26 = arith.constant 0 : index
    %c0_27 = arith.constant 0 : index
    %41 = vector.load %arg4[%c1_24, %c0_25, %c0_26, %c0_27] : memref<3x3x8x384xf32, #tpu.memory_space<vmem>>, vector<1x1x8x384xf32>
    %42 = vector.shape_cast %41 : vector<1x1x8x384xf32> to vector<8x384xf32>
    %43 = arith.mulf %42, %40 : vector<8x384xf32>
    %44 = vector.extract_strided_slice %43 {offsets = [0, 0], sizes = [8, 128], strides = [1, 1]} : vector<8x384xf32> to vector<8x128xf32>
    %45 = vector.extract_strided_slice %43 {offsets = [0, 128], sizes = [8, 128], strides = [1, 1]} : vector<8x384xf32> to vector<8x128xf32>
    %46 = arith.addf %44, %45 : vector<8x128xf32>
    %47 = vector.extract_strided_slice %43 {offsets = [0, 256], sizes = [8, 128], strides = [1, 1]} : vector<8x384xf32> to vector<8x128xf32>
    %48 = arith.addf %46, %47 : vector<8x128xf32>
    %c1_28 = arith.constant 1 : index
    %c1_29 = arith.constant 1 : index
    %c0_30 = arith.constant 0 : index
    %c0_31 = arith.constant 0 : index
    %49 = vector.load %arg4[%c1_28, %c1_29, %c0_30, %c0_31] : memref<3x3x8x384xf32, #tpu.memory_space<vmem>>, vector<1x1x8x384xf32>
    %50 = vector.shape_cast %49 : vector<1x1x8x384xf32> to vector<8x384xf32>
    %51 = arith.mulf %50, %40 : vector<8x384xf32>
    %52 = vector.extract_strided_slice %51 {offsets = [0, 0], sizes = [8, 128], strides = [1, 1]} : vector<8x384xf32> to vector<8x128xf32>
    %53 = vector.extract_strided_slice %51 {offsets = [0, 128], sizes = [8, 128], strides = [1, 1]} : vector<8x384xf32> to vector<8x128xf32>
    %54 = arith.addf %52, %53 : vector<8x128xf32>
    %55 = vector.extract_strided_slice %51 {offsets = [0, 256], sizes = [8, 128], strides = [1, 1]} : vector<8x384xf32> to vector<8x128xf32>
    %56 = arith.addf %54, %55 : vector<8x128xf32>
    %c1_32 = arith.constant 1 : index
    %c2_33 = arith.constant 2 : index
    %c0_34 = arith.constant 0 : index
    %c0_35 = arith.constant 0 : index
    %57 = vector.load %arg4[%c1_32, %c2_33, %c0_34, %c0_35] : memref<3x3x8x384xf32, #tpu.memory_space<vmem>>, vector<1x1x8x384xf32>
    %58 = vector.shape_cast %57 : vector<1x1x8x384xf32> to vector<8x384xf32>
    %59 = arith.mulf %58, %40 : vector<8x384xf32>
    %60 = vector.extract_strided_slice %59 {offsets = [0, 0], sizes = [8, 128], strides = [1, 1]} : vector<8x384xf32> to vector<8x128xf32>
    %61 = vector.extract_strided_slice %59 {offsets = [0, 128], sizes = [8, 128], strides = [1, 1]} : vector<8x384xf32> to vector<8x128xf32>
    %62 = arith.addf %60, %61 : vector<8x128xf32>
    %63 = vector.extract_strided_slice %59 {offsets = [0, 256], sizes = [8, 128], strides = [1, 1]} : vector<8x384xf32> to vector<8x128xf32>
    %64 = arith.addf %62, %63 : vector<8x128xf32>
    %65 = tpu.concatenate %48, %56, %64 in 1 : vector<8x128xf32>, vector<8x128xf32>, vector<8x128xf32> -> vector<8x384xf32>
    %c1_36 = arith.constant 1 : index
    %c0_37 = arith.constant 0 : index
    %c0_38 = arith.constant 0 : index
    %66 = vector.load %arg2[%c1_36, %c0_37, %c0_38] : memref<2x384x384xf32, #tpu.memory_space<vmem>>, vector<1x384x384xf32>
    %67 = vector.shape_cast %66 : vector<1x384x384xf32> to vector<384x384xf32>
    %cst_39 = arith.constant dense<0.000000e+00> : vector<8x384xf32>
    %68 = tpu.matmul %65, %67, %cst_39 {dimension_numbers = #tpu.dot_dimension_numbers<[1], [0], [0], [1], [0, 0, 1, 1], [], []>} : vector<8x384xf32>, vector<384x384xf32>, vector<8x384xf32> -> vector<8x384xf32>
    %c2_40 = arith.constant 2 : index
    %c0_41 = arith.constant 0 : index
    %c0_42 = arith.constant 0 : index
    %69 = vector.load %arg5[%c2_40, %c0_41, %c0_42] : memref<3x1x384xf32, #tpu.memory_space<vmem>>, vector<1x1x384xf32>
    %70 = vector.shape_cast %69 : vector<1x1x384xf32> to vector<1x384xf32>
    %71 = vector.broadcast %70 : vector<1x384xf32> to vector<8x384xf32>
    %72 = arith.addf %68, %71 : vector<8x384xf32>
    %cst_43 = arith.constant 0.000000e+00 : f32
    %73 = vector.broadcast %cst_43 : f32 to vector<8x384xf32>
    %74 = arith.maximumf %72, %73 : vector<8x384xf32>
    %c2_44 = arith.constant 2 : index
    %c0_45 = arith.constant 0 : index
    %c0_46 = arith.constant 0 : index
    %c0_47 = arith.constant 0 : index
    %75 = vector.load %arg4[%c2_44, %c0_45, %c0_46, %c0_47] : memref<3x3x8x384xf32, #tpu.memory_space<vmem>>, vector<1x1x8x384xf32>
    %76 = vector.shape_cast %75 : vector<1x1x8x384xf32> to vector<8x384xf32>
    %77 = arith.mulf %76, %74 : vector<8x384xf32>
    %78 = vector.extract_strided_slice %77 {offsets = [0, 0], sizes = [8, 128], strides = [1, 1]} : vector<8x384xf32> to vector<8x128xf32>
    %79 = vector.extract_strided_slice %77 {offsets = [0, 128], sizes = [8, 128], strides = [1, 1]} : vector<8x384xf32> to vector<8x128xf32>
    %80 = arith.addf %78, %79 : vector<8x128xf32>
    %81 = vector.extract_strided_slice %77 {offsets = [0, 256], sizes = [8, 128], strides = [1, 1]} : vector<8x384xf32> to vector<8x128xf32>
    %82 = arith.addf %80, %81 : vector<8x128xf32>
    %c0_48 = arith.constant 0 : index
    %c0_49 = arith.constant 0 : index
    %83 = vector.load %arg3[%c0_48, %c0_49] : memref<128x128xf32, #tpu.memory_space<vmem>>, vector<128x128xf32>
    %cst_50 = arith.constant dense<0.000000e+00> : vector<8x128xf32>
    %84 = tpu.matmul %82, %83, %cst_50 {dimension_numbers = #tpu.dot_dimension_numbers<[1], [0], [0], [1], [0, 0, 1, 1], [], []>} : vector<8x128xf32>, vector<128x128xf32>, vector<8x128xf32> -> vector<8x128xf32>
    %c0_51 = arith.constant 0 : index
    %c0_52 = arith.constant 0 : index
    %85 = vector.load %arg6[%c0_51, %c0_52] : memref<1x128xf32, #tpu.memory_space<vmem>>, vector<1x128xf32>
    %86 = vector.broadcast %85 : vector<1x128xf32> to vector<8x128xf32>
    %87 = arith.addf %84, %86 : vector<8x128xf32>
    %c0_53 = arith.constant 0 : index
    %c0_54 = arith.constant 0 : index
    %88 = vector.load %arg7[%c0_53, %c0_54] : memref<8x128xf32, #tpu.memory_space<vmem>>, vector<8x128xf32>
    tpu.vector_store %arg7[%c0_53, %c0_54], %87 {strides = array<i32>} : memref<8x128xf32, #tpu.memory_space<vmem>>, vector<8x128xf32>,
    return
  }
}

</mosaic_0001>

<llo_original>
// kernel: gated_modular_net_forward.1
$region0: #{gated_modular_net_forward.1}
  #allocation0 [shape = 'u32[]', space=smem, size = 0x4, offset = 0x4, fixed_abs, tag = 'smem constant byte address 0x4 - core index']
  #allocation1 [shape = 'u32[72,128]{1,0:T(1,128)}', space=vmem, size = 0x9000, scoped, tag = 'internal scratch']
  %s0 = inlined_call_operand.vmem [shape: f32[8,128], index: 0, kind: input, shape index: {}]
  %s1 = inlined_call_operand.hbm [shape: f32[128,384], index: 1, kind: input, shape index: {}]
  %s2 = inlined_call_operand.hbm [shape: f32[2,384,384], index: 2, kind: input, shape index: {}]
  %s3 = inlined_call_operand.hbm [shape: f32[128,128], index: 3, kind: input, shape index: {}]
  %s4 = inlined_call_operand.vmem [shape: f32[3,3,8,384], index: 4, kind: input, shape index: {}]
  %s5 = inlined_call_operand.hbm [shape: f32[3,1,384], index: 5, kind: input, shape index: {}]
  %s6 = inlined_call_operand.hbm [shape: f32[1,128], index: 6, kind: input, shape index: {}]
  %s7 = inlined_call_operand.vmem [shape: f32[8,128], index: 7, kind: output, shape index: {}]
  %s8 = sld [smem:[#allocation0]]
  $region58: #{gated_modular_net_forward.1} parent=0
    _
  %s10 = ssub.s32 1, %s8
  %s11 = scalar_select 0, %s10, %s8
  $region1: #{gated_modular_net_forward.1} parent=0
    #allocation2 [shape = 'u8[196608]{0}', space=vmem, size = 0x30000, scoped, tag = 'input window, operand 1, single buffered']
    #allocation3 [shape = 's32[1]{0}', space=sflag, size = 0x4, scoped, tag = 'scoped memory for gated_modular_net_forward.1']
    #allocation4 [shape = 'u8[1179648]{0}', space=vmem, size = 0x120000, scoped, tag = 'input window, operand 2, single buffered']
    #allocation5 [shape = 's32[1]{0}', space=sflag, size = 0x4, scoped, tag = 'scoped memory for gated_modular_net_forward.1']
    #allocation6 [shape = 'u8[65536]{0}', space=vmem, size = 0x10000, scoped, tag = 'input window, operand 3, single buffered']
    #allocation7 [shape = 'u8[4608]{0}', space=vmem, size = 0x1400, scoped, tag = 'input window, operand 5, single buffered']
    #allocation8 [shape = 's32[1]{0}', space=sflag, size = 0x4, scoped, tag = 'scoped memory for gated_modular_net_forward.1']
    #allocation9 [shape = 'u8[512]{0}', space=vmem, size = 0x400, scoped, tag = 'input window, operand 6, single buffered']
    %12 = vsyncpa [#allocation3], 0
    %13 = vsyncpa [#allocation5], 0
    %14 = vsyncpa [#allocation8], 0
    // Predicated region
    $region2: #{gated_modular_net_forward.1} parent=1 // pred_check
      _
    $region3: #{gated_modular_net_forward.1} parent=1 // pred_check_branch
      %16 = sbr.rel (0) target = $region5
    $region4: #{gated_modular_net_forward.1} parent=1 // pred_region
      _
    $region5: #{gated_modular_net_forward.1} parent=1 // pred_fallthru
      _
    // Predicated region
    $region6: #{gated_modular_net_forward.1} parent=1 // pred_check
      _
    $region7: #{gated_modular_net_forward.1} parent=1 // pred_check_branch
      %18 = sbr.rel (0) target = $region9
    $region8: #{gated_modular_net_forward.1} parent=1 // pred_region
      %20 = vsyncadd [#allocation3], 0
      %s21 = sshll.u32 %s1, 4
      %s22 = int_to_ptr.hbm [resolvable:$true] %s21
      %s23 = sshll.u32 [#allocation2], 4
      %s24 = int_to_ptr.vmem [resolvable:$true] %s23
      %29 = dma.hbm_to_vmem [thread:$0]  %s22, 6144, %s24, [#allocation3], 384, 384, 24
    $region9: #{gated_modular_net_forward.1} parent=1 // pred_fallthru
      _
    // Predicated region
    $region10: #{gated_modular_net_forward.1} parent=1 // pred_check
      _
    $region11: #{gated_modular_net_forward.1} parent=1 // pred_check_branch
      %31 = sbr.rel (0) target = $region13
    $region12: #{gated_modular_net_forward.1} parent=1 // pred_region
      %33 = vsyncadd [#allocation5], 0
      %s34 = sshll.u32 %s2, 4
      %s35 = int_to_ptr.hbm [resolvable:$true] %s34
      %s36 = sshll.u32 [#allocation4], 4
      %s37 = int_to_ptr.vmem [resolvable:$true] %s36
      %42 = dma.hbm_to_vmem [thread:$0]  %s35, 36864, %s37, [#allocation5], 384, 384, 24
    $region13: #{gated_modular_net_forward.1} parent=1 // pred_fallthru
      _
    // Predicated region
    $region14: #{gated_modular_net_forward.1} parent=1 // pred_check
      _
    $region15: #{gated_modular_net_forward.1} parent=1 // pred_check_branch
      %44 = sbr.rel (0) target = $region17
    $region16: #{gated_modular_net_forward.1} parent=1 // pred_region
      %46 = vsyncadd [#allocation5], 0
      %s47 = sshll.u32 %s3, 4
      %s48 = int_to_ptr.hbm [resolvable:$true] %s47
      %s49 = sshll.u32 [#allocation6], 4
      %s50 = int_to_ptr.vmem [resolvable:$true] %s49
      %55 = dma.hbm_to_vmem [thread:$0]  %s48, 2048, %s50, [#allocation5], 128, 128, 8
    $region17: #{gated_modular_net_forward.1} parent=1 // pred_fallthru
      _
    // Predicated region
    $region18: #{gated_modular_net_forward.1} parent=1 // pred_check
      _
    $region19: #{gated_modular_net_forward.1} parent=1 // pred_check_branch
      %57 = sbr.rel (0) target = $region21
    $region20: #{gated_modular_net_forward.1} parent=1 // pred_region
      _
    $region21: #{gated_modular_net_forward.1} parent=1 // pred_fallthru
      _
    // Predicated region
    $region22: #{gated_modular_net_forward.1} parent=1 // pred_check
      _
    $region23: #{gated_modular_net_forward.1} parent=1 // pred_check_branch
      %59 = sbr.rel (0) target = $region25
    $region24: #{gated_modular_net_forward.1} parent=1 // pred_region
      %61 = vsyncadd [#allocation8], 0
      %s62 = sshll.u32 %s5, 4
      %s63 = int_to_ptr.hbm [resolvable:$true] %s62
      %s64 = sshll.u32 [#allocation7], 4
      %s65 = int_to_ptr.vmem [resolvable:$true] %s64
      %70 = dma.hbm_to_vmem [thread:$0]  %s63, 144, %s65, [#allocation8], 48, 48, 3
    $region25: #{gated_modular_net_forward.1} parent=1 // pred_fallthru
      _
    // Predicated region
    $region26: #{gated_modular_net_forward.1} parent=1 // pred_check
      _
    $region27: #{gated_modular_net_forward.1} parent=1 // pred_check_branch
      %72 = sbr.rel (0) target = $region29
    $region28: #{gated_modular_net_forward.1} parent=1 // pred_region
      %74 = vsyncadd [#allocation8], 0
      %s76 = sshll.u32 %s6, 4
      %s77 = int_to_ptr.hbm [resolvable:$true] %s76
      %s78 = sshll.u32 [#allocation9], 4
      %s79 = int_to_ptr.vmem [resolvable:$true] %s78
      %81 = dma.hbm_to_vmem [thread:$0]  %s77, 16, %s79, [#allocation8]
    $region29: #{gated_modular_net_forward.1} parent=1 // pred_fallthru
      _
    // Predicated region
    $region30: #{gated_modular_net_forward.1} parent=1 // pred_check
      _
    $region31: #{gated_modular_net_forward.1} parent=1 // pred_check_branch
      %83 = sbr.rel (0) target = $region33
    $region32: #{gated_modular_net_forward.1} parent=1 // pred_region
      %85 = dma.done [#allocation3], 6144
    $region33: #{gated_modular_net_forward.1} parent=1 // pred_fallthru
      _
    // Predicated region
    $region34: #{gated_modular_net_forward.1} parent=1 // pred_check
      _
    $region35: #{gated_modular_net_forward.1} parent=1 // pred_check_branch
      %87 = sbr.rel (0) target = $region37
    $region36: #{gated_modular_net_forward.1} parent=1 // pred_region
      %89 = dma.done [#allocation5], 36864
    $region37: #{gated_modular_net_forward.1} parent=1 // pred_fallthru
      _
    // Predicated region
    $region38: #{gated_modular_net_forward.1} parent=1 // pred_check
      _
    $region39: #{gated_modular_net_forward.1} parent=1 // pred_check_branch
      %91 = sbr.rel (0) target = $region41
    $region40: #{gated_modular_net_forward.1} parent=1 // pred_region
      %93 = dma.done [#allocation5], 2048
    $region41: #{gated_modular_net_forward.1} parent=1 // pred_fallthru
      _
    // Predicated region
    $region42: #{gated_modular_net_forward.1} parent=1 // pred_check
      _
    $region43: #{gated_modular_net_forward.1} parent=1 // pred_check_branch
      %95 = sbr.rel (0) target = $region45
    $region44: #{gated_modular_net_forward.1} parent=1 // pred_region
      %97 = dma.done [#allocation8], 144
    $region45: #{gated_modular_net_forward.1} parent=1 // pred_fallthru
      _
    // Predicated region
    $region46: #{gated_modular_net_forward.1} parent=1 // pred_check
      _
    $region47: #{gated_modular_net_forward.1} parent=1 // pred_check_branch
      %99 = sbr.rel (0) target = $region49
    $region48: #{gated_modular_net_forward.1} parent=1 // pred_region
      %101 = dma.done [#allocation8], 16
    $region49: #{gated_modular_net_forward.1} parent=1 // pred_fallthru
      _
    %v102 = vld [vmem:[%s0] sm:$0xff]
    %v103 = vld [vmem:[#allocation2] sm:$0xff]
    %v104 = vld [vmem:[#allocation2 + $0x8] sm:$0xff]
    %v105 = vld [vmem:[#allocation2 + $0x10] sm:$0xff]
    %v106 = vld [vmem:[#allocation2 + $0x18] sm:$0xff]
    %v107 = vld [vmem:[#allocation2 + $0x20] sm:$0xff]
    %v108 = vld [vmem:[#allocation2 + $0x28] sm:$0xff]
    %v109 = vld [vmem:[#allocation2 + $0x30] sm:$0xff]
    %v110 = vld [vmem:[#allocation2 + $0x38] sm:$0xff]
    %v111 = vld [vmem:[#allocation2 + $0x40] sm:$0xff]
    %v112 = vld [vmem:[#allocation2 + $0x48] sm:$0xff]
    %v113 = vld [vmem:[#allocation2 + $0x50] sm:$0xff]
    %v114 = vld [vmem:[#allocation2 + $0x58] sm:$0xff]
    %v115 = vld [vmem:[#allocation2 + $0x60] sm:$0xff]
    %v116 = vld [vmem:[#allocation2 + $0x68] sm:$0xff]
    %v117 = vld [vmem:[#allocation2 + $0x70] sm:$0xff]
    %v118 = vld [vmem:[#allocation2 + $0x78] sm:$0xff]
    %v119 = vld [vmem:[#allocation2 + $0x80] sm:$0xff]
    %v120 = vld [vmem:[#allocation2 + $0x88] sm:$0xff]
    %v121 = vld [vmem:[#allocation2 + $0x90] sm:$0xff]
    %v122 = vld [vmem:[#allocation2 + $0x98] sm:$0xff]
    %v123 = vld [vmem:[#allocation2 + $0xa0] sm:$0xff]
    %v124 = vld [vmem:[#allocation2 + $0xa8] sm:$0xff]
    %v125 = vld [vmem:[#allocation2 + $0xb0] sm:$0xff]
    %v126 = vld [vmem:[#allocation2 + $0xb8] sm:$0xff]
    %v127 = vld [vmem:[#allocation2 + $0xc0] sm:$0xff]
    %v128 = vld [vmem:[#allocation2 + $0xc8] sm:$0xff]
    %v129 = vld [vmem:[#allocation2 + $0xd0] sm:$0xff]
    %v130 = vld [vmem:[#allocation2 + $0xd8] sm:$0xff]
    %v131 = vld [vmem:[#allocation2 + $0xe0] sm:$0xff]
    %v132 = vld [vmem:[#allocation2 + $0xe8] sm:$0xff]
    %v133 = vld [vmem:[#allocation2 + $0xf0] sm:$0xff]
    %v134 = vld [vmem:[#allocation2 + $0xf8] sm:$0xff]
    %v135 = vld [vmem:[#allocation2 + $0x100] sm:$0xff]
    %v136 = vld [vmem:[#allocation2 + $0x108] sm:$0xff]
    %v137 = vld [vmem:[#allocation2 + $0x110] sm:$0xff]
    %v138 = vld [vmem:[#allocation2 + $0x118] sm:$0xff]
    %v139 = vld [vmem:[#allocation2 + $0x120] sm:$0xff]
    %v140 = vld [vmem:[#allocation2 + $0x128] sm:$0xff]
    %v141 = vld [vmem:[#allocation2 + $0x130] sm:$0xff]
    %v142 = vld [vmem:[#allocation2 + $0x138] sm:$0xff]
    %v143 = vld [vmem:[#allocation2 + $0x140] sm:$0xff]
    %v144 = vld [vmem:[#allocation2 + $0x148] sm:$0xff]
    %v145 = vld [vmem:[#allocation2 + $0x150] sm:$0xff]
    %v146 = vld [vmem:[#allocation2 + $0x158] sm:$0xff]
    %v147 = vld [vmem:[#allocation2 + $0x160] sm:$0xff]
    %v148 = vld [vmem:[#allocation2 + $0x168] sm:$0xff]
    %v149 = vld [vmem:[#allocation2 + $0x170] sm:$0xff]
    %v150 = vld [vmem:[#allocation2 + $0x178] sm:$0xff]
    %v151 = vld [vmem:[#allocation7] sm:$0x7]
    %v153 = vperm.slane %v151, 0
    %v154 = vperm.slane %v151, 1
    %v155 = vperm.slane %v151, 2
    %159 = vmatpush.msra.mxu0 %v148
    %160 = vmatpush.msra.mxu0 %v145
    %161 = vmatpush.msra.mxu0 %v142
    %162 = vmatpush.msra.mxu0 %v139
    %163 = vmatpush.msra.mxu0 %v136
    %164 = vmatpush.msra.mxu0 %v133
    %165 = vmatpush.msra.mxu0 %v130
    %166 = vmatpush.msra.mxu0 %v127
    %167 = vmatpush.msra.mxu0 %v124
    %168 = vmatpush.msra.mxu0 %v121
    %169 = vmatpush.msra.mxu0 %v118
    %170 = vmatpush.msra.mxu0 %v115
    %171 = vmatpush.msra.mxu0 %v112
    %172 = vmatpush.msra.mxu0 %v109
    %173 = vmatpush.msra.mxu0 %v106
    %174 = vmatpush.msra.mxu0 %v103
    %175 = vmatmul.f32.gmra.mxu0 %v102
    %v176 = vpop.f32.mrf.mxu0
    %v177 = vadd.f32 %v153, %v176
    %178 = vdwg.mxu0
    %179 = vmatpush.msra.mxu0 %v149
    %180 = vmatpush.msra.mxu0 %v146
    %181 = vmatpush.msra.mxu0 %v143
    %182 = vmatpush.msra.mxu0 %v140
    %183 = vmatpush.msra.mxu0 %v137
    %184 = vmatpush.msra.mxu0 %v134
    %185 = vmatpush.msra.mxu0 %v131
    %186 = vmatpush.msra.mxu0 %v128
    %187 = vmatpush.msra.mxu0 %v125
    %188 = vmatpush.msra.mxu0 %v122
    %189 = vmatpush.msra.mxu0 %v119
    %190 = vmatpush.msra.mxu0 %v116
    %191 = vmatpush.msra.mxu0 %v113
    %192 = vmatpush.msra.mxu0 %v110
    %193 = vmatpush.msra.mxu0 %v107
    %194 = vmatpush.msra.mxu0 %v104
    %195 = vmatmul.f32.gmra.mxu0 %v102
    %v196 = vpop.f32.mrf.mxu0
    %v197 = vadd.f32 %v154, %v196
    %198 = vdwg.mxu0
    %199 = vmatpush.msra.mxu0 %v150
    %200 = vmatpush.msra.mxu0 %v147
    %201 = vmatpush.msra.mxu0 %v144
    %202 = vmatpush.msra.mxu0 %v141
    %203 = vmatpush.msra.mxu0 %v138
    %204 = vmatpush.msra.mxu0 %v135
    %205 = vmatpush.msra.mxu0 %v132
    %206 = vmatpush.msra.mxu0 %v129
    %207 = vmatpush.msra.mxu0 %v126
    %208 = vmatpush.msra.mxu0 %v123
    %209 = vmatpush.msra.mxu0 %v120
    %210 = vmatpush.msra.mxu0 %v117
    %211 = vmatpush.msra.mxu0 %v114
    %212 = vmatpush.msra.mxu0 %v111
    %213 = vmatpush.msra.mxu0 %v108
    %214 = vmatpush.msra.mxu0 %v105
    %215 = vmatmul.f32.gmra.mxu0 %v102
    %v216 = vpop.f32.mrf.mxu0
    %v217 = vadd.f32 %v155, %v216
    %218 = vdwg.mxu0
    %v219 = vld [vmem:[%s4] sm:$0xff]
    %v220 = vld [vmem:[%s4 + $0x8] sm:$0xff]
    %v221 = vld [vmem:[%s4 + $0x10] sm:$0xff]
    %v222 = vmul.f32 %v219, %v177
    %v223 = vmul.f32 %v220, %v197
    %v224 = vmul.f32 %v221, %v217
    %v225 = vadd.f32 %v222, %v223
    %v226 = vadd.f32 %v225, %v224
    %s227 = scalar_lea.vmem %s4, 24
    %v228 = vld [vmem:[%s227] sm:$0xff]
    %v229 = vld [vmem:[%s227 + $0x8] sm:$0xff]
    %v230 = vld [vmem:[%s227 + $0x10] sm:$0xff]
    %v231 = vmul.f32 %v228, %v177
    %v232 = vmul.f32 %v229, %v197
    %v233 = vmul.f32 %v230, %v217
    %v234 = vadd.f32 %v231, %v232
    %v235 = vadd.f32 %v234, %v233
    %s236 = scalar_lea.vmem %s4, 48
    %v237 = vld [vmem:[%s236] sm:$0xff]
    %v238 = vld [vmem:[%s236 + $0x8] sm:$0xff]
    %v239 = vld [vmem:[%s236 + $0x10] sm:$0xff]
    %v240 = vmul.f32 %v237, %v177
    %v241 = vmul.f32 %v238, %v197
    %v242 = vmul.f32 %v239, %v217
    %v243 = vadd.f32 %v240, %v241
    %v244 = vadd.f32 %v243, %v242
    %v245 = vld [vmem:[#allocation4] sm:$0xff]
    %v246 = vld [vmem:[#allocation4 + $0x8] sm:$0xff]
    %v247 = vld [vmem:[#allocation4 + $0x10] sm:$0xff]
    %v248 = vld [vmem:[#allocation4 + $0x18] sm:$0xff]
    %v249 = vld [vmem:[#allocation4 + $0x20] sm:$0xff]
    %v250 = vld [vmem:[#allocation4 + $0x28] sm:$0xff]
    %v251 = vld [vmem:[#allocation4 + $0x30] sm:$0xff]
    %v252 = vld [vmem:[#allocation4 + $0x38] sm:$0xff]
    %v253 = vld [vmem:[#allocation4 + $0x40] sm:$0xff]
    %v254 = vld [vmem:[#allocation4 + $0x48] sm:$0xff]
    %v255 = vld [vmem:[#allocation4 + $0x50] sm:$0xff]
    %v256 = vld [vmem:[#allocation4 + $0x58] sm:$0xff]
    %v257 = vld [vmem:[#allocation4 + $0x60] sm:$0xff]
    %v258 = vld [vmem:[#allocation4 + $0x68] sm:$0xff]
    %v259 = vld [vmem:[#allocation4 + $0x70] sm:$0xff]
    %v260 = vld [vmem:[#allocation4 + $0x78] sm:$0xff]
    %v261 = vld [vmem:[#allocation4 + $0x80] sm:$0xff]
    %v262 = vld [vmem:[#allocation4 + $0x88] sm:$0xff]
    %v263 = vld [vmem:[#allocation4 + $0x90] sm:$0xff]
    %v264 = vld [vmem:[#allocation4 + $0x98] sm:$0xff]
    %v265 = vld [vmem:[#allocation4 + $0xa0] sm:$0xff]
    %v266 = vld [vmem:[#allocation4 + $0xa8] sm:$0xff]
    %v267 = vld [vmem:[#allocation4 + $0xb0] sm:$0xff]
    %v268 = vld [vmem:[#allocation4 + $0xb8] sm:$0xff]
    %v269 = vld [vmem:[#allocation4 + $0xc0] sm:$0xff]
    %v270 = vld [vmem:[#allocation4 + $0xc8] sm:$0xff]
    %v271 = vld [vmem:[#allocation4 + $0xd0] sm:$0xff]
    %v272 = vld [vmem:[#allocation4 + $0xd8] sm:$0xff]
    %v273 = vld [vmem:[#allocation4 + $0xe0] sm:$0xff]
    %v274 = vld [vmem:[#allocation4 + $0xe8] sm:$0xff]
    %v275 = vld [vmem:[#allocation4 + $0xf0] sm:$0xff]
    %v276 = vld [vmem:[#allocation4 + $0xf8] sm:$0xff]
    %v277 = vld [vmem:[#allocation4 + $0x100] sm:$0xff]
    %v278 = vld [vmem:[#allocation4 + $0x108] sm:$0xff]
    %v279 = vld [vmem:[#allocation4 + $0x110] sm:$0xff]
    %v280 = vld [vmem:[#allocation4 + $0x118] sm:$0xff]
    %v281 = vld [vmem:[#allocation4 + $0x120] sm:$0xff]
    %v282 = vld [vmem:[#allocation4 + $0x128] sm:$0xff]
    %v283 = vld [vmem:[#allocation4 + $0x130] sm:$0xff]
    %v284 = vld [vmem:[#allocation4 + $0x138] sm:$0xff]
    %v285 = vld [vmem:[#allocation4 + $0x140] sm:$0xff]
    %v286 = vld [vmem:[#allocation4 + $0x148] sm:$0xff]
    %v287 = vld [vmem:[#allocation4 + $0x150] sm:$0xff]
    %v288 = vld [vmem:[#allocation4 + $0x158] sm:$0xff]
    %v289 = vld [vmem:[#allocation4 + $0x160] sm:$0xff]
    %v290 = vld [vmem:[#allocation4 + $0x168] sm:$0xff]
    %v291 = vld [vmem:[#allocation4 + $0x170] sm:$0xff]
    %v292 = vld [vmem:[#allocation4 + $0x178] sm:$0xff]
    %v293 = vld [vmem:[#allocation4 + $0x180] sm:$0xff]
    %v294 = vld [vmem:[#allocation4 + $0x188] sm:$0xff]
    %v295 = vld [vmem:[#allocation4 + $0x190] sm:$0xff]
    %v296 = vld [vmem:[#allocation4 + $0x198] sm:$0xff]
    %v297 = vld [vmem:[#allocation4 + $0x1a0] sm:$0xff]
    %v298 = vld [vmem:[#allocation4 + $0x1a8] sm:$0xff]
    %v299 = vld [vmem:[#allocation4 + $0x1b0] sm:$0xff]
    %v300 = vld [vmem:[#allocation4 + $0x1b8] sm:$0xff]
    %v301 = vld [vmem:[#allocation4 + $0x1c0] sm:$0xff]
    %v302 = vld [vmem:[#allocation4 + $0x1c8] sm:$0xff]
    %v303 = vld [vmem:[#allocation4 + $0x1d0] sm:$0xff]
    %v304 = vld [vmem:[#allocation4 + $0x1d8] sm:$0xff]
    %v305 = vld [vmem:[#allocation4 + $0x1e0] sm:$0xff]
    %v306 = vld [vmem:[#allocation4 + $0x1e8] sm:$0xff]
    %v307 = vld [vmem:[#allocation4 + $0x1f0] sm:$0xff]
    %v308 = vld [vmem:[#allocation4 + $0x1f8] sm:$0xff]
    %v309 = vld [vmem:[#allocation4 + $0x200] sm:$0xff]
    %v310 = vld [vmem:[#allocation4 + $0x208] sm:$0xff]
    %v311 = vld [vmem:[#allocation4 + $0x210] sm:$0xff]
    %v312 = vld [vmem:[#allocation4 + $0x218] sm:$0xff]
    %v313 = vld [vmem:[#allocation4 + $0x220] sm:$0xff]
    %v314 = vld [vmem:[#allocation4 + $0x228] sm:$0xff]
    %v315 = vld [vmem:[#allocation4 + $0x230] sm:$0xff]
    %v316 = vld [vmem:[#allocation4 + $0x238] sm:$0xff]
    %v317 = vld [vmem:[#allocation4 + $0x240] sm:$0xff]
    %v318 = vld [vmem:[#allocation4 + $0x248] sm:$0xff]
    %v319 = vld [vmem:[#allocation4 + $0x250] sm:$0xff]
    %v320 = vld [vmem:[#allocation4 + $0x258] sm:$0xff]
    %v321 = vld [vmem:[#allocation4 + $0x260] sm:$0xff]
    %v322 = vld [vmem:[#allocation4 + $0x268] sm:$0xff]
    %v323 = vld [vmem:[#allocation4 + $0x270] sm:$0xff]
    %v324 = vld [vmem:[#allocation4 + $0x278] sm:$0xff]
    %v325 = vld [vmem:[#allocation4 + $0x280] sm:$0xff]
    %v326 = vld [vmem:[#allocation4 + $0x288] sm:$0xff]
    %v327 = vld [vmem:[#allocation4 + $0x290] sm:$0xff]
    %v328 = vld [vmem:[#allocation4 + $0x298] sm:$0xff]
    %v329 = vld [vmem:[#allocation4 + $0x2a0] sm:$0xff]
    %v330 = vld [vmem:[#allocation4 + $0x2a8] sm:$0xff]
    %v331 = vld [vmem:[#allocation4 + $0x2b0] sm:$0xff]
    %v332 = vld [vmem:[#allocation4 + $0x2b8] sm:$0xff]
    %v333 = vld [vmem:[#allocation4 + $0x2c0] sm:$0xff]
    %v334 = vld [vmem:[#allocation4 + $0x2c8] sm:$0xff]
    %v335 = vld [vmem:[#allocation4 + $0x2d0] sm:$0xff]
    %v336 = vld [vmem:[#allocation4 + $0x2d8] sm:$0xff]
    %v337 = vld [vmem:[#allocation4 + $0x2e0] sm:$0xff]
    %v338 = vld [vmem:[#allocation4 + $0x2e8] sm:$0xff]
    %v339 = vld [vmem:[#allocation4 + $0x2f0] sm:$0xff]
    %v340 = vld [vmem:[#allocation4 + $0x2f8] sm:$0xff]
    %v341 = vld [vmem:[#allocation4 + $0x300] sm:$0xff]
    %v342 = vld [vmem:[#allocation4 + $0x308] sm:$0xff]
    %v343 = vld [vmem:[#allocation4 + $0x310] sm:$0xff]
    %v344 = vld [vmem:[#allocation4 + $0x318] sm:$0xff]
    %v345 = vld [vmem:[#allocation4 + $0x320] sm:$0xff]
    %v346 = vld [vmem:[#allocation4 + $0x328] sm:$0xff]
    %v347 = vld [vmem:[#allocation4 + $0x330] sm:$0xff]
    %v348 = vld [vmem:[#allocation4 + $0x338] sm:$0xff]
    %v349 = vld [vmem:[#allocation4 + $0x340] sm:$0xff]
    %v350 = vld [vmem:[#allocation4 + $0x348] sm:$0xff]
    %v351 = vld [vmem:[#allocation4 + $0x350] sm:$0xff]
    %v352 = vld [vmem:[#allocation4 + $0x358] sm:$0xff]
    %v353 = vld [vmem:[#allocation4 + $0x360] sm:$0xff]
    %v354 = vld [vmem:[#allocation4 + $0x368] sm:$0xff]
    %v355 = vld [vmem:[#allocation4 + $0x370] sm:$0xff]
    %v356 = vld [vmem:[#allocation4 + $0x378] sm:$0xff]
    %v357 = vld [vmem:[#allocation4 + $0x380] sm:$0xff]
    %v358 = vld [vmem:[#allocation4 + $0x388] sm:$0xff]
    %v359 = vld [vmem:[#allocation4 + $0x390] sm:$0xff]
    %v360 = vld [vmem:[#allocation4 + $0x398] sm:$0xff]
    %v361 = vld [vmem:[#allocation4 + $0x3a0] sm:$0xff]
    %v362 = vld [vmem:[#allocation4 + $0x3a8] sm:$0xff]
    %v363 = vld [vmem:[#allocation4 + $0x3b0] sm:$0xff]
    %v364 = vld [vmem:[#allocation4 + $0x3b8] sm:$0xff]
    %v365 = vld [vmem:[#allocation4 + $0x3c0] sm:$0xff]
    %v366 = vld [vmem:[#allocation4 + $0x3c8] sm:$0xff]
    %v367 = vld [vmem:[#allocation4 + $0x3d0] sm:$0xff]
    %v368 = vld [vmem:[#allocation4 + $0x3d8] sm:$0xff]
    %v369 = vld [vmem:[#allocation4 + $0x3e0] sm:$0xff]
    %v370 = vld [vmem:[#allocation4 + $0x3e8] sm:$0xff]
    %v371 = vld [vmem:[#allocation4 + $0x3f0] sm:$0xff]
    %v372 = vld [vmem:[#allocation4 + $0x3f8] sm:$0xff]
    %v373 = vld [vmem:[#allocation4 + $0x400] sm:$0xff]
    %v374 = vld [vmem:[#allocation4 + $0x408] sm:$0xff]
    %v375 = vld [vmem:[#allocation4 + $0x410] sm:$0xff]
    %v376 = vld [vmem:[#allocation4 + $0x418] sm:$0xff]
    %v377 = vld [vmem:[#allocation4 + $0x420] sm:$0xff]
    %v378 = vld [vmem:[#allocation4 + $0x428] sm:$0xff]
    %v379 = vld [vmem:[#allocation4 + $0x430] sm:$0xff]
    %v380 = vld [vmem:[#allocation4 + $0x438] sm:$0xff]
    %v381 = vld [vmem:[#allocation4 + $0x440] sm:$0xff]
    %v382 = vld [vmem:[#allocation4 + $0x448] sm:$0xff]
    %v383 = vld [vmem:[#allocation4 + $0x450] sm:$0xff]
    %v384 = vld [vmem:[#allocation4 + $0x458] sm:$0xff]
    %v385 = vld [vmem:[#allocation4 + $0x460] sm:$0xff]
    %v386 = vld [vmem:[#allocation4 + $0x468] sm:$0xff]
    %v387 = vld [vmem:[#allocation4 + $0x470] sm:$0xff]
    %v388 = vld [vmem:[#allocation4 + $0x478] sm:$0xff]
    %s389 = scalar_lea.vmem [#allocation7], 3
    %v390 = vld [vmem:[%s389] sm:$0x7]
    %v392 = vperm.slane %v390, 0
    %v393 = vperm.slane %v390, 1
    %v394 = vperm.slane %v390, 2
    %398 = vmatpush.msra.mxu0 %v290
    %399 = vmatpush.msra.mxu0 %v287
    %400 = vmatpush.msra.mxu0 %v284
    %401 = vmatpush.msra.mxu0 %v281
    %402 = vmatpush.msra.mxu0 %v278
    %403 = vmatpush.msra.mxu0 %v275
    %404 = vmatpush.msra.mxu0 %v272
    %405 = vmatpush.msra.mxu0 %v269
    %406 = vmatpush.msra.mxu0 %v266
    %407 = vmatpush.msra.mxu0 %v263
    %408 = vmatpush.msra.mxu0 %v260
    %409 = vmatpush.msra.mxu0 %v257
    %410 = vmatpush.msra.mxu0 %v254
    %411 = vmatpush.msra.mxu0 %v251
    %412 = vmatpush.msra.mxu0 %v248
    %413 = vmatpush.msra.mxu0 %v245
    %414 = vmatmul.f32.gmra.mxu0 %v226
    %v415 = vpop.f32.mrf.mxu0
    %v416 = vadd.f32 %v392, %v415
    %417 = vdwg.mxu0
    %418 = vmatpush.msra.mxu0 %v338
    %419 = vmatpush.msra.mxu0 %v335
    %420 = vmatpush.msra.mxu0 %v332
    %421 = vmatpush.msra.mxu0 %v329
    %422 = vmatpush.msra.mxu0 %v326
    %423 = vmatpush.msra.mxu0 %v323
    %424 = vmatpush.msra.mxu0 %v320
    %425 = vmatpush.msra.mxu0 %v317
    %426 = vmatpush.msra.mxu0 %v314
    %427 = vmatpush.msra.mxu0 %v311
    %428 = vmatpush.msra.mxu0 %v308
    %429 = vmatpush.msra.mxu0 %v305
    %430 = vmatpush.msra.mxu0 %v302
    %431 = vmatpush.msra.mxu0 %v299
    %432 = vmatpush.msra.mxu0 %v296
    %433 = vmatpush.msra.mxu0 %v293
    %434 = vmatmul.f32.gmra.mxu0 %v235
    %v435 = vpop.f32.mrf.mxu0
    %v436 = vadd.f32 %v416, %v435
    %437 = vdwg.mxu0
    %438 = vmatpush.msra.mxu0 %v386
    %439 = vmatpush.msra.mxu0 %v383
    %440 = vmatpush.msra.mxu0 %v380
    %441 = vmatpush.msra.mxu0 %v377
    %442 = vmatpush.msra.mxu0 %v374
    %443 = vmatpush.msra.mxu0 %v371
    %444 = vmatpush.msra.mxu0 %v368
    %445 = vmatpush.msra.mxu0 %v365
    %446 = vmatpush.msra.mxu0 %v362
    %447 = vmatpush.msra.mxu0 %v359
    %448 = vmatpush.msra.mxu0 %v356
    %449 = vmatpush.msra.mxu0 %v353
    %450 = vmatpush.msra.mxu0 %v350
    %451 = vmatpush.msra.mxu0 %v347
    %452 = vmatpush.msra.mxu0 %v344
    %453 = vmatpush.msra.mxu0 %v341
    %454 = vmatmul.f32.gmra.mxu0 %v244
    %v455 = vpop.f32.mrf.mxu0
    %v456 = vadd.f32 %v436, %v455
    %457 = vdwg.mxu0
    %458 = vmatpush.msra.mxu0 %v291
    %459 = vmatpush.msra.mxu0 %v288
    %460 = vmatpush.msra.mxu0 %v285
    %461 = vmatpush.msra.mxu0 %v282
    %462 = vmatpush.msra.mxu0 %v279
    %463 = vmatpush.msra.mxu0 %v276
    %464 = vmatpush.msra.mxu0 %v273
    %465 = vmatpush.msra.mxu0 %v270
    %466 = vmatpush.msra.mxu0 %v267
    %467 = vmatpush.msra.mxu0 %v264
    %468 = vmatpush.msra.mxu0 %v261
    %469 = vmatpush.msra.mxu0 %v258
    %470 = vmatpush.msra.mxu0 %v255
    %471 = vmatpush.msra.mxu0 %v252
    %472 = vmatpush.msra.mxu0 %v249
    %473 = vmatpush.msra.mxu0 %v246
    %474 = vmatmul.f32.gmra.mxu0 %v226
    %v475 = vpop.f32.mrf.mxu0
    %v476 = vadd.f32 %v393, %v475
    %477 = vdwg.mxu0
    %478 = vmatpush.msra.mxu0 %v339
    %479 = vmatpush.msra.mxu0 %v336
    %480 = vmatpush.msra.mxu0 %v333
    %481 = vmatpush.msra.mxu0 %v330
    %482 = vmatpush.msra.mxu0 %v327
    %483 = vmatpush.msra.mxu0 %v324
    %484 = vmatpush.msra.mxu0 %v321
    %485 = vmatpush.msra.mxu0 %v318
    %486 = vmatpush.msra.mxu0 %v315
    %487 = vmatpush.msra.mxu0 %v312
    %488 = vmatpush.msra.mxu0 %v309
    %489 = vmatpush.msra.mxu0 %v306
    %490 = vmatpush.msra.mxu0 %v303
    %491 = vmatpush.msra.mxu0 %v300
    %492 = vmatpush.msra.mxu0 %v297
    %493 = vmatpush.msra.mxu0 %v294
    %494 = vmatmul.f32.gmra.mxu0 %v235
    %v495 = vpop.f32.mrf.mxu0
    %v496 = vadd.f32 %v476, %v495
    %497 = vdwg.mxu0
    %498 = vmatpush.msra.mxu0 %v387
    %499 = vmatpush.msra.mxu0 %v384
    %500 = vmatpush.msra.mxu0 %v381
    %501 = vmatpush.msra.mxu0 %v378
    %502 = vmatpush.msra.mxu0 %v375
    %503 = vmatpush.msra.mxu0 %v372
    %504 = vmatpush.msra.mxu0 %v369
    %505 = vmatpush.msra.mxu0 %v366
    %506 = vmatpush.msra.mxu0 %v363
    %507 = vmatpush.msra.mxu0 %v360
    %508 = vmatpush.msra.mxu0 %v357
    %509 = vmatpush.msra.mxu0 %v354
    %510 = vmatpush.msra.mxu0 %v351
    %511 = vmatpush.msra.mxu0 %v348
    %512 = vmatpush.msra.mxu0 %v345
    %513 = vmatpush.msra.mxu0 %v342
    %514 = vmatmul.f32.gmra.mxu0 %v244
    %v515 = vpop.f32.mrf.mxu0
    %v516 = vadd.f32 %v496, %v515
    %517 = vdwg.mxu0
    %518 = vmatpush.msra.mxu0 %v292
    %519 = vmatpush.msra.mxu0 %v289
    %520 = vmatpush.msra.mxu0 %v286
    %521 = vmatpush.msra.mxu0 %v283
    %522 = vmatpush.msra.mxu0 %v280
    %523 = vmatpush.msra.mxu0 %v277
    %524 = vmatpush.msra.mxu0 %v274
    %525 = vmatpush.msra.mxu0 %v271
    %526 = vmatpush.msra.mxu0 %v268
    %527 = vmatpush.msra.mxu0 %v265
    %528 = vmatpush.msra.mxu0 %v262
    %529 = vmatpush.msra.mxu0 %v259
    %530 = vmatpush.msra.mxu0 %v256
    %531 = vmatpush.msra.mxu0 %v253
    %532 = vmatpush.msra.mxu0 %v250
    %533 = vmatpush.msra.mxu0 %v247
    %534 = vmatmul.f32.gmra.mxu0 %v226
    %v535 = vpop.f32.mrf.mxu0
    %v536 = vadd.f32 %v394, %v535
    %537 = vdwg.mxu0
    %538 = vmatpush.msra.mxu0 %v340
    %539 = vmatpush.msra.mxu0 %v337
    %540 = vmatpush.msra.mxu0 %v334
    %541 = vmatpush.msra.mxu0 %v331
    %542 = vmatpush.msra.mxu0 %v328
    %543 = vmatpush.msra.mxu0 %v325
    %544 = vmatpush.msra.mxu0 %v322
    %545 = vmatpush.msra.mxu0 %v319
    %546 = vmatpush.msra.mxu0 %v316
    %547 = vmatpush.msra.mxu0 %v313
    %548 = vmatpush.msra.mxu0 %v310
    %549 = vmatpush.msra.mxu0 %v307
    %550 = vmatpush.msra.mxu0 %v304
    %551 = vmatpush.msra.mxu0 %v301
    %552 = vmatpush.msra.mxu0 %v298
    %553 = vmatpush.msra.mxu0 %v295
    %554 = vmatmul.f32.gmra.mxu0 %v235
    %v555 = vpop.f32.mrf.mxu0
    %v556 = vadd.f32 %v536, %v555
    %557 = vdwg.mxu0
    %558 = vmatpush.msra.mxu0 %v388
    %559 = vmatpush.msra.mxu0 %v385
    %560 = vmatpush.msra.mxu0 %v382
    %561 = vmatpush.msra.mxu0 %v379
    %562 = vmatpush.msra.mxu0 %v376
    %563 = vmatpush.msra.mxu0 %v373
    %564 = vmatpush.msra.mxu0 %v370
    %565 = vmatpush.msra.mxu0 %v367
    %566 = vmatpush.msra.mxu0 %v364
    %567 = vmatpush.msra.mxu0 %v361
    %568 = vmatpush.msra.mxu0 %v358
    %569 = vmatpush.msra.mxu0 %v355
    %570 = vmatpush.msra.mxu0 %v352
    %571 = vmatpush.msra.mxu0 %v349
    %572 = vmatpush.msra.mxu0 %v346
    %573 = vmatpush.msra.mxu0 %v343
    %574 = vmatmul.f32.gmra.mxu0 %v244
    %v575 = vpop.f32.mrf.mxu0
    %v576 = vadd.f32 %v556, %v575
    %577 = vdwg.mxu0
    %v578 = vmax.f32 %v456, 0.0
    %v579 = vmax.f32 %v516, 0.0
    %v580 = vmax.f32 %v576, 0.0
    %s581 = scalar_lea.vmem %s4, 72
    %v582 = vld [vmem:[%s581] sm:$0xff]
    %v583 = vld [vmem:[%s581 + $0x8] sm:$0xff]
    %v584 = vld [vmem:[%s581 + $0x10] sm:$0xff]
    %v585 = vmul.f32 %v582, %v578
    %v586 = vmul.f32 %v583, %v579
    %v587 = vmul.f32 %v584, %v580
    %v588 = vadd.f32 %v585, %v586
    %v589 = vadd.f32 %v588, %v587
    %s590 = scalar_lea.vmem %s4, 96
    %v591 = vld [vmem:[%s590] sm:$0xff]
    %v592 = vld [vmem:[%s590 + $0x8] sm:$0xff]
    %v593 = vld [vmem:[%s590 + $0x10] sm:$0xff]
    %v594 = vmul.f32 %v591, %v578
    %v595 = vmul.f32 %v592, %v579
    %v596 = vmul.f32 %v593, %v580
    %v597 = vadd.f32 %v594, %v595
    %v598 = vadd.f32 %v597, %v596
    %s599 = scalar_lea.vmem %s4, 120
    %v600 = vld [vmem:[%s599] sm:$0xff]
    %v601 = vld [vmem:[%s599 + $0x8] sm:$0xff]
    %v602 = vld [vmem:[%s599 + $0x10] sm:$0xff]
    %v603 = vmul.f32 %v600, %v578
    %v604 = vmul.f32 %v601, %v579
    %v605 = vmul.f32 %v602, %v580
    %v606 = vadd.f32 %v603, %v604
    %v607 = vadd.f32 %v606, %v605
    %s608 = scalar_lea.vmem [#allocation4], 1152
    %v609 = vld [vmem:[%s608] sm:$0xff]
    %v610 = vld [vmem:[%s608 + $0x8] sm:$0xff]
    %v611 = vld [vmem:[%s608 + $0x10] sm:$0xff]
    %v612 = vld [vmem:[%s608 + $0x18] sm:$0xff]
    %v613 = vld [vmem:[%s608 + $0x20] sm:$0xff]
    %v614 = vld [vmem:[%s608 + $0x28] sm:$0xff]
    %v615 = vld [vmem:[%s608 + $0x30] sm:$0xff]
    %v616 = vld [vmem:[%s608 + $0x38] sm:$0xff]
    %v617 = vld [vmem:[%s608 + $0x40] sm:$0xff]
    %v618 = vld [vmem:[%s608 + $0x48] sm:$0xff]
    %v619 = vld [vmem:[%s608 + $0x50] sm:$0xff]
    %v620 = vld [vmem:[%s608 + $0x58] sm:$0xff]
    %v621 = vld [vmem:[%s608 + $0x60] sm:$0xff]
    %v622 = vld [vmem:[%s608 + $0x68] sm:$0xff]
    %v623 = vld [vmem:[%s608 + $0x70] sm:$0xff]
    %v624 = vld [vmem:[%s608 + $0x78] sm:$0xff]
    %v625 = vld [vmem:[%s608 + $0x80] sm:$0xff]
    %v626 = vld [vmem:[%s608 + $0x88] sm:$0xff]
    %v627 = vld [vmem:[%s608 + $0x90] sm:$0xff]
    %v628 = vld [vmem:[%s608 + $0x98] sm:$0xff]
    %v629 = vld [vmem:[%s608 + $0xa0] sm:$0xff]
    %v630 = vld [vmem:[%s608 + $0xa8] sm:$0xff]
    %v631 = vld [vmem:[%s608 + $0xb0] sm:$0xff]
    %v632 = vld [vmem:[%s608 + $0xb8] sm:$0xff]
    %v633 = vld [vmem:[%s608 + $0xc0] sm:$0xff]
    %v634 = vld [vmem:[%s608 + $0xc8] sm:$0xff]
    %v635 = vld [vmem:[%s608 + $0xd0] sm:$0xff]
    %v636 = vld [vmem:[%s608 + $0xd8] sm:$0xff]
    %v637 = vld [vmem:[%s608 + $0xe0] sm:$0xff]
    %v638 = vld [vmem:[%s608 + $0xe8] sm:$0xff]
    %v639 = vld [vmem:[%s608 + $0xf0] sm:$0xff]
    %v640 = vld [vmem:[%s608 + $0xf8] sm:$0xff]
    %v641 = vld [vmem:[%s608 + $0x100] sm:$0xff]
    %v642 = vld [vmem:[%s608 + $0x108] sm:$0xff]
    %v643 = vld [vmem:[%s608 + $0x110] sm:$0xff]
    %v644 = vld [vmem:[%s608 + $0x118] sm:$0xff]
    %v645 = vld [vmem:[%s608 + $0x120] sm:$0xff]
    %v646 = vld [vmem:[%s608 + $0x128] sm:$0xff]
    %v647 = vld [vmem:[%s608 + $0x130] sm:$0xff]
    %v648 = vld [vmem:[%s608 + $0x138] sm:$0xff]
    %v649 = vld [vmem:[%s608 + $0x140] sm:$0xff]
    %v650 = vld [vmem:[%s608 + $0x148] sm:$0xff]
    %v651 = vld [vmem:[%s608 + $0x150] sm:$0xff]
    %v652 = vld [vmem:[%s608 + $0x158] sm:$0xff]
    %v653 = vld [vmem:[%s608 + $0x160] sm:$0xff]
    %v654 = vld [vmem:[%s608 + $0x168] sm:$0xff]
    %v655 = vld [vmem:[%s608 + $0x170] sm:$0xff]
    %v656 = vld [vmem:[%s608 + $0x178] sm:$0xff]
    %v657 = vld [vmem:[%s608 + $0x180] sm:$0xff]
    %v658 = vld [vmem:[%s608 + $0x188] sm:$0xff]
    %v659 = vld [vmem:[%s608 + $0x190] sm:$0xff]
    %v660 = vld [vmem:[%s608 + $0x198] sm:$0xff]
    %v661 = vld [vmem:[%s608 + $0x1a0] sm:$0xff]
    %v662 = vld [vmem:[%s608 + $0x1a8] sm:$0xff]
    %v663 = vld [vmem:[%s608 + $0x1b0] sm:$0xff]
    %v664 = vld [vmem:[%s608 + $0x1b8] sm:$0xff]
    %v665 = vld [vmem:[%s608 + $0x1c0] sm:$0xff]
    %v666 = vld [vmem:[%s608 + $0x1c8] sm:$0xff]
    %v667 = vld [vmem:[%s608 + $0x1d0] sm:$0xff]
    %v668 = vld [vmem:[%s608 + $0x1d8] sm:$0xff]
    %v669 = vld [vmem:[%s608 + $0x1e0] sm:$0xff]
    %v670 = vld [vmem:[%s608 + $0x1e8] sm:$0xff]
    %v671 = vld [vmem:[%s608 + $0x1f0] sm:$0xff]
    %v672 = vld [vmem:[%s608 + $0x1f8] sm:$0xff]
    %v673 = vld [vmem:[%s608 + $0x200] sm:$0xff]
    %v674 = vld [vmem:[%s608 + $0x208] sm:$0xff]
    %v675 = vld [vmem:[%s608 + $0x210] sm:$0xff]
    %v676 = vld [vmem:[%s608 + $0x218] sm:$0xff]
    %v677 = vld [vmem:[%s608 + $0x220] sm:$0xff]
    %v678 = vld [vmem:[%s608 + $0x228] sm:$0xff]
    %v679 = vld [vmem:[%s608 + $0x230] sm:$0xff]
    %v680 = vld [vmem:[%s608 + $0x238] sm:$0xff]
    %v681 = vld [vmem:[%s608 + $0x240] sm:$0xff]
    %v682 = vld [vmem:[%s608 + $0x248] sm:$0xff]
    %v683 = vld [vmem:[%s608 + $0x250] sm:$0xff]
    %v684 = vld [vmem:[%s608 + $0x258] sm:$0xff]
    %v685 = vld [vmem:[%s608 + $0x260] sm:$0xff]
    %v686 = vld [vmem:[%s608 + $0x268] sm:$0xff]
    %v687 = vld [vmem:[%s608 + $0x270] sm:$0xff]
    %v688 = vld [vmem:[%s608 + $0x278] sm:$0xff]
    %v689 = vld [vmem:[%s608 + $0x280] sm:$0xff]
    %v690 = vld [vmem:[%s608 + $0x288] sm:$0xff]
    %v691 = vld [vmem:[%s608 + $0x290] sm:$0xff]
    %v692 = vld [vmem:[%s608 + $0x298] sm:$0xff]
    %v693 = vld [vmem:[%s608 + $0x2a0] sm:$0xff]
    %v694 = vld [vmem:[%s608 + $0x2a8] sm:$0xff]
    %v695 = vld [vmem:[%s608 + $0x2b0] sm:$0xff]
    %v696 = vld [vmem:[%s608 + $0x2b8] sm:$0xff]
    %v697 = vld [vmem:[%s608 + $0x2c0] sm:$0xff]
    %v698 = vld [vmem:[%s608 + $0x2c8] sm:$0xff]
    %v699 = vld [vmem:[%s608 + $0x2d0] sm:$0xff]
    %v700 = vld [vmem:[%s608 + $0x2d8] sm:$0xff]
    %v701 = vld [vmem:[%s608 + $0x2e0] sm:$0xff]
    %v702 = vld [vmem:[%s608 + $0x2e8] sm:$0xff]
    %v703 = vld [vmem:[%s608 + $0x2f0] sm:$0xff]
    %v704 = vld [vmem:[%s608 + $0x2f8] sm:$0xff]
    %v705 = vld [vmem:[%s608 + $0x300] sm:$0xff]
    %v706 = vld [vmem:[%s608 + $0x308] sm:$0xff]
    %v707 = vld [vmem:[%s608 + $0x310] sm:$0xff]
    %v708 = vld [vmem:[%s608 + $0x318] sm:$0xff]
    %v709 = vld [vmem:[%s608 + $0x320] sm:$0xff]
    %v710 = vld [vmem:[%s608 + $0x328] sm:$0xff]
    %v711 = vld [vmem:[%s608 + $0x330] sm:$0xff]
    %v712 = vld [vmem:[%s608 + $0x338] sm:$0xff]
    %v713 = vld [vmem:[%s608 + $0x340] sm:$0xff]
    %v714 = vld [vmem:[%s608 + $0x348] sm:$0xff]
    %v715 = vld [vmem:[%s608 + $0x350] sm:$0xff]
    %v716 = vld [vmem:[%s608 + $0x358] sm:$0xff]
    %v717 = vld [vmem:[%s608 + $0x360] sm:$0xff]
    %v718 = vld [vmem:[%s608 + $0x368] sm:$0xff]
    %v719 = vld [vmem:[%s608 + $0x370] sm:$0xff]
    %v720 = vld [vmem:[%s608 + $0x378] sm:$0xff]
    %v721 = vld [vmem:[%s608 + $0x380] sm:$0xff]
    %v722 = vld [vmem:[%s608 + $0x388] sm:$0xff]
    %v723 = vld [vmem:[%s608 + $0x390] sm:$0xff]
    %v724 = vld [vmem:[%s608 + $0x398] sm:$0xff]
    %v725 = vld [vmem:[%s608 + $0x3a0] sm:$0xff]
    %v726 = vld [vmem:[%s608 + $0x3a8] sm:$0xff]
    %v727 = vld [vmem:[%s608 + $0x3b0] sm:$0xff]
    %v728 = vld [vmem:[%s608 + $0x3b8] sm:$0xff]
    %v729 = vld [vmem:[%s608 + $0x3c0] sm:$0xff]
    %v730 = vld [vmem:[%s608 + $0x3c8] sm:$0xff]
    %v731 = vld [vmem:[%s608 + $0x3d0] sm:$0xff]
    %v732 = vld [vmem:[%s608 + $0x3d8] sm:$0xff]
    %v733 = vld [vmem:[%s608 + $0x3e0] sm:$0xff]
    %v734 = vld [vmem:[%s608 + $0x3e8] sm:$0xff]
    %v735 = vld [vmem:[%s608 + $0x3f0] sm:$0xff]
    %v736 = vld [vmem:[%s608 + $0x3f8] sm:$0xff]
    %v737 = vld [vmem:[%s608 + $0x400] sm:$0xff]
    %v738 = vld [vmem:[%s608 + $0x408] sm:$0xff]
    %v739 = vld [vmem:[%s608 + $0x410] sm:$0xff]
    %v740 = vld [vmem:[%s608 + $0x418] sm:$0xff]
    %v741 = vld [vmem:[%s608 + $0x420] sm:$0xff]
    %v742 = vld [vmem:[%s608 + $0x428] sm:$0xff]
    %v743 = vld [vmem:[%s608 + $0x430] sm:$0xff]
    %v744 = vld [vmem:[%s608 + $0x438] sm:$0xff]
    %v745 = vld [vmem:[%s608 + $0x440] sm:$0xff]
    %v746 = vld [vmem:[%s608 + $0x448] sm:$0xff]
    %v747 = vld [vmem:[%s608 + $0x450] sm:$0xff]
    %v748 = vld [vmem:[%s608 + $0x458] sm:$0xff]
    %v749 = vld [vmem:[%s608 + $0x460] sm:$0xff]
    %v750 = vld [vmem:[%s608 + $0x468] sm:$0xff]
    %v751 = vld [vmem:[%s608 + $0x470] sm:$0xff]
    %v752 = vld [vmem:[%s608 + $0x478] sm:$0xff]
    %s753 = scalar_lea.vmem [#allocation7], 6
    %v754 = vld [vmem:[%s753] sm:$0x7]
    %v756 = vperm.slane %v754, 0
    %v757 = vperm.slane %v754, 1
    %v758 = vperm.slane %v754, 2
    %762 = vmatpush.msra.mxu0 %v654
    %763 = vmatpush.msra.mxu0 %v651
    %764 = vmatpush.msra.mxu0 %v648
    %765 = vmatpush.msra.mxu0 %v645
    %766 = vmatpush.msra.mxu0 %v642
    %767 = vmatpush.msra.mxu0 %v639
    %768 = vmatpush.msra.mxu0 %v636
    %769 = vmatpush.msra.mxu0 %v633
    %770 = vmatpush.msra.mxu0 %v630
    %771 = vmatpush.msra.mxu0 %v627
    %772 = vmatpush.msra.mxu0 %v624
    %773 = vmatpush.msra.mxu0 %v621
    %774 = vmatpush.msra.mxu0 %v618
    %775 = vmatpush.msra.mxu0 %v615
    %776 = vmatpush.msra.mxu0 %v612
    %777 = vmatpush.msra.mxu0 %v609
    %778 = vmatmul.f32.gmra.mxu0 %v589
    %v779 = vpop.f32.mrf.mxu0
    %v780 = vadd.f32 %v756, %v779
    %781 = vdwg.mxu0
    %782 = vmatpush.msra.mxu0 %v702
    %783 = vmatpush.msra.mxu0 %v699
    %784 = vmatpush.msra.mxu0 %v696
    %785 = vmatpush.msra.mxu0 %v693
    %786 = vmatpush.msra.mxu0 %v690
    %787 = vmatpush.msra.mxu0 %v687
    %788 = vmatpush.msra.mxu0 %v684
    %789 = vmatpush.msra.mxu0 %v681
    %790 = vmatpush.msra.mxu0 %v678
    %791 = vmatpush.msra.mxu0 %v675
    %792 = vmatpush.msra.mxu0 %v672
    %793 = vmatpush.msra.mxu0 %v669
    %794 = vmatpush.msra.mxu0 %v666
    %795 = vmatpush.msra.mxu0 %v663
    %796 = vmatpush.msra.mxu0 %v660
    %797 = vmatpush.msra.mxu0 %v657
    %798 = vmatmul.f32.gmra.mxu0 %v598
    %v799 = vpop.f32.mrf.mxu0
    %v800 = vadd.f32 %v780, %v799
    %801 = vdwg.mxu0
    %802 = vmatpush.msra.mxu0 %v750
    %803 = vmatpush.msra.mxu0 %v747
    %804 = vmatpush.msra.mxu0 %v744
    %805 = vmatpush.msra.mxu0 %v741
    %806 = vmatpush.msra.mxu0 %v738
    %807 = vmatpush.msra.mxu0 %v735
    %808 = vmatpush.msra.mxu0 %v732
    %809 = vmatpush.msra.mxu0 %v729
    %810 = vmatpush.msra.mxu0 %v726
    %811 = vmatpush.msra.mxu0 %v723
    %812 = vmatpush.msra.mxu0 %v720
    %813 = vmatpush.msra.mxu0 %v717
    %814 = vmatpush.msra.mxu0 %v714
    %815 = vmatpush.msra.mxu0 %v711
    %816 = vmatpush.msra.mxu0 %v708
    %817 = vmatpush.msra.mxu0 %v705
    %818 = vmatmul.f32.gmra.mxu0 %v607
    %v819 = vpop.f32.mrf.mxu0
    %v820 = vadd.f32 %v800, %v819
    %821 = vdwg.mxu0
    %822 = vmatpush.msra.mxu0 %v655
    %823 = vmatpush.msra.mxu0 %v652
    %824 = vmatpush.msra.mxu0 %v649
    %825 = vmatpush.msra.mxu0 %v646
    %826 = vmatpush.msra.mxu0 %v643
    %827 = vmatpush.msra.mxu0 %v640
    %828 = vmatpush.msra.mxu0 %v637
    %829 = vmatpush.msra.mxu0 %v634
    %830 = vmatpush.msra.mxu0 %v631
    %831 = vmatpush.msra.mxu0 %v628
    %832 = vmatpush.msra.mxu0 %v625
    %833 = vmatpush.msra.mxu0 %v622
    %834 = vmatpush.msra.mxu0 %v619
    %835 = vmatpush.msra.mxu0 %v616
    %836 = vmatpush.msra.mxu0 %v613
    %837 = vmatpush.msra.mxu0 %v610
    %838 = vmatmul.f32.gmra.mxu0 %v589
    %v839 = vpop.f32.mrf.mxu0
    %v840 = vadd.f32 %v757, %v839
    %841 = vdwg.mxu0
    %842 = vmatpush.msra.mxu0 %v703
    %843 = vmatpush.msra.mxu0 %v700
    %844 = vmatpush.msra.mxu0 %v697
    %845 = vmatpush.msra.mxu0 %v694
    %846 = vmatpush.msra.mxu0 %v691
    %847 = vmatpush.msra.mxu0 %v688
    %848 = vmatpush.msra.mxu0 %v685
    %849 = vmatpush.msra.mxu0 %v682
    %850 = vmatpush.msra.mxu0 %v679
    %851 = vmatpush.msra.mxu0 %v676
    %852 = vmatpush.msra.mxu0 %v673
    %853 = vmatpush.msra.mxu0 %v670
    %854 = vmatpush.msra.mxu0 %v667
    %855 = vmatpush.msra.mxu0 %v664
    %856 = vmatpush.msra.mxu0 %v661
    %857 = vmatpush.msra.mxu0 %v658
    %858 = vmatmul.f32.gmra.mxu0 %v598
    %v859 = vpop.f32.mrf.mxu0
    %v860 = vadd.f32 %v840, %v859
    %861 = vdwg.mxu0
    %862 = vmatpush.msra.mxu0 %v751
    %863 = vmatpush.msra.mxu0 %v748
    %864 = vmatpush.msra.mxu0 %v745
    %865 = vmatpush.msra.mxu0 %v742
    %866 = vmatpush.msra.mxu0 %v739
    %867 = vmatpush.msra.mxu0 %v736
    %868 = vmatpush.msra.mxu0 %v733
    %869 = vmatpush.msra.mxu0 %v730
    %870 = vmatpush.msra.mxu0 %v727
    %871 = vmatpush.msra.mxu0 %v724
    %872 = vmatpush.msra.mxu0 %v721
    %873 = vmatpush.msra.mxu0 %v718
    %874 = vmatpush.msra.mxu0 %v715
    %875 = vmatpush.msra.mxu0 %v712
    %876 = vmatpush.msra.mxu0 %v709
    %877 = vmatpush.msra.mxu0 %v706
    %878 = vmatmul.f32.gmra.mxu0 %v607
    %v879 = vpop.f32.mrf.mxu0
    %v880 = vadd.f32 %v860, %v879
    %881 = vdwg.mxu0
    %882 = vmatpush.msra.mxu0 %v656
    %883 = vmatpush.msra.mxu0 %v653
    %884 = vmatpush.msra.mxu0 %v650
    %885 = vmatpush.msra.mxu0 %v647
    %886 = vmatpush.msra.mxu0 %v644
    %887 = vmatpush.msra.mxu0 %v641
    %888 = vmatpush.msra.mxu0 %v638
    %889 = vmatpush.msra.mxu0 %v635
    %890 = vmatpush.msra.mxu0 %v632
    %891 = vmatpush.msra.mxu0 %v629
    %892 = vmatpush.msra.mxu0 %v626
    %893 = vmatpush.msra.mxu0 %v623
    %894 = vmatpush.msra.mxu0 %v620
    %895 = vmatpush.msra.mxu0 %v617
    %896 = vmatpush.msra.mxu0 %v614
    %897 = vmatpush.msra.mxu0 %v611
    %898 = vmatmul.f32.gmra.mxu0 %v589
    %v899 = vpop.f32.mrf.mxu0
    %v900 = vadd.f32 %v758, %v899
    %901 = vdwg.mxu0
    %902 = vmatpush.msra.mxu0 %v704
    %903 = vmatpush.msra.mxu0 %v701
    %904 = vmatpush.msra.mxu0 %v698
    %905 = vmatpush.msra.mxu0 %v695
    %906 = vmatpush.msra.mxu0 %v692
    %907 = vmatpush.msra.mxu0 %v689
    %908 = vmatpush.msra.mxu0 %v686
    %909 = vmatpush.msra.mxu0 %v683
    %910 = vmatpush.msra.mxu0 %v680
    %911 = vmatpush.msra.mxu0 %v677
    %912 = vmatpush.msra.mxu0 %v674
    %913 = vmatpush.msra.mxu0 %v671
    %914 = vmatpush.msra.mxu0 %v668
    %915 = vmatpush.msra.mxu0 %v665
    %916 = vmatpush.msra.mxu0 %v662
    %917 = vmatpush.msra.mxu0 %v659
    %918 = vmatmul.f32.gmra.mxu0 %v598
    %v919 = vpop.f32.mrf.mxu0
    %v920 = vadd.f32 %v900, %v919
    %921 = vdwg.mxu0
    %922 = vmatpush.msra.mxu0 %v752
    %923 = vmatpush.msra.mxu0 %v749
    %924 = vmatpush.msra.mxu0 %v746
    %925 = vmatpush.msra.mxu0 %v743
    %926 = vmatpush.msra.mxu0 %v740
    %927 = vmatpush.msra.mxu0 %v737
    %928 = vmatpush.msra.mxu0 %v734
    %929 = vmatpush.msra.mxu0 %v731
    %930 = vmatpush.msra.mxu0 %v728
    %931 = vmatpush.msra.mxu0 %v725
    %932 = vmatpush.msra.mxu0 %v722
    %933 = vmatpush.msra.mxu0 %v719
    %934 = vmatpush.msra.mxu0 %v716
    %935 = vmatpush.msra.mxu0 %v713
    %936 = vmatpush.msra.mxu0 %v710
    %937 = vmatpush.msra.mxu0 %v707
    %938 = vmatmul.f32.gmra.mxu0 %v607
    %v939 = vpop.f32.mrf.mxu0
    %v940 = vadd.f32 %v920, %v939
    %941 = vdwg.mxu0
    %v942 = vmax.f32 %v820, 0.0
    %v943 = vmax.f32 %v880, 0.0
    %v944 = vmax.f32 %v940, 0.0
    %s945 = scalar_lea.vmem %s4, 144
    %v946 = vld [vmem:[%s945] sm:$0xff]
    %v947 = vld [vmem:[%s945 + $0x8] sm:$0xff]
    %v948 = vld [vmem:[%s945 + $0x10] sm:$0xff]
    %v949 = vmul.f32 %v946, %v942
    %v950 = vmul.f32 %v947, %v943
    %v951 = vmul.f32 %v948, %v944
    %v952 = vadd.f32 %v949, %v950
    %v953 = vadd.f32 %v952, %v951
    %v954 = vld [vmem:[#allocation6] sm:$0xff]
    %v955 = vld [vmem:[#allocation6 + $0x8] sm:$0xff]
    %v956 = vld [vmem:[#allocation6 + $0x10] sm:$0xff]
    %v957 = vld [vmem:[#allocation6 + $0x18] sm:$0xff]
    %v958 = vld [vmem:[#allocation6 + $0x20] sm:$0xff]
    %v959 = vld [vmem:[#allocation6 + $0x28] sm:$0xff]
    %v960 = vld [vmem:[#allocation6 + $0x30] sm:$0xff]
    %v961 = vld [vmem:[#allocation6 + $0x38] sm:$0xff]
    %v962 = vld [vmem:[#allocation6 + $0x40] sm:$0xff]
    %v963 = vld [vmem:[#allocation6 + $0x48] sm:$0xff]
    %v964 = vld [vmem:[#allocation6 + $0x50] sm:$0xff]
    %v965 = vld [vmem:[#allocation6 + $0x58] sm:$0xff]
    %v966 = vld [vmem:[#allocation6 + $0x60] sm:$0xff]
    %v967 = vld [vmem:[#allocation6 + $0x68] sm:$0xff]
    %v968 = vld [vmem:[#allocation6 + $0x70] sm:$0xff]
    %v969 = vld [vmem:[#allocation6 + $0x78] sm:$0xff]
    %v970 = vld [vmem:[#allocation9] sm:$0x1]
    %v972 = vperm.slane %v970, 0
    %974 = vmatpush.msra.mxu0 %v969
    %975 = vmatpush.msra.mxu0 %v968
    %976 = vmatpush.msra.mxu0 %v967
    %977 = vmatpush.msra.mxu0 %v966
    %978 = vmatpush.msra.mxu0 %v965
    %979 = vmatpush.msra.mxu0 %v964
    %980 = vmatpush.msra.mxu0 %v963
    %981 = vmatpush.msra.mxu0 %v962
    %982 = vmatpush.msra.mxu0 %v961
    %983 = vmatpush.msra.mxu0 %v960
    %984 = vmatpush.msra.mxu0 %v959
    %985 = vmatpush.msra.mxu0 %v958
    %986 = vmatpush.msra.mxu0 %v957
    %987 = vmatpush.msra.mxu0 %v956
    %988 = vmatpush.msra.mxu0 %v955
    %989 = vmatpush.msra.mxu0 %v954
    %990 = vmatmul.f32.gmra.mxu0 %v953
    %v991 = vpop.f32.mrf.mxu0
    %v992 = vadd.f32 %v972, %v991
    %993 = vdwg.mxu0
    %994 = vst [vmem:[%s7] sm:$0xff] %v992
    // Predicated region
    $region50: #{gated_modular_net_forward.1} parent=1 // pred_check
      _
    $region51: #{gated_modular_net_forward.1} parent=1 // pred_check_branch
      %996 = sbr.rel (0) target = $region53
    $region52: #{gated_modular_net_forward.1} parent=1 // pred_region
      _
    $region53: #{gated_modular_net_forward.1} parent=1 // pred_fallthru
      _
    // Predicated region
    $region54: #{gated_modular_net_forward.1} parent=1 // pred_check
      _
    $region55: #{gated_modular_net_forward.1} parent=1 // pred_check_branch
      %998 = sbr.rel (0) target = $region57
    $region56: #{gated_modular_net_forward.1} parent=1 // pred_region
      _
    $region57: #{gated_modular_net_forward.1} parent=1 // pred_fallthru
      _
    %999 = vsyncpa [#allocation3], 1
    %1000 = vsyncpa [#allocation5], 1
    %1001 = vsyncpa [#allocation8], 1

</llo_original>
